<compile_context>
chip_gen: v7x
topology: tpu7x:2x2x1
jax: 0.10.0
libtpu: 0.0.40
codegen_flags: <defaults>
</compile_context>

<pallas_src>
import functools
import math

import jax
import jax.numpy as jnp
from jax.experimental import pallas as pl
from jax.experimental.pallas import tpu as pltpu


def _blend_kernel(fg_ref, bg_ref, w_ref, b_ref, out_ref, mask_ref):
    fg = fg_ref[...]                          # (1, C, T) activation dtype
    bg = bg_ref[...]                          # (1, C, T) activation dtype
    w = w_ref[...]                            # (1, C, 1) f32 (gain pre-folded)
    b = b_ref[...]                            # (1, 1, 1) f32
    # 1x1 conv over channels == per-channel scale + reduce over the sublane
    # (channel) axis.  fg * w promotes to f32 -> accurate reduction; pure
    # VPU/XLU/EUP work, the MXU is deliberately not used.
    logits = jnp.sum(fg * w, axis=1, keepdims=True) + b      # (1, 1, T) f32
    mask_f32 = jax.nn.sigmoid(logits)                        # EUP
    mask_act = mask_f32.astype(fg.dtype)
    # Blend in the activation dtype: one mask broadcast, one (C,T) multiply.
    out_ref[...] = (fg + (bg - fg) * mask_act).astype(out_ref.dtype)
    mask_ref[...] = mask_f32.astype(mask_ref.dtype)


def _round_up(x, m):
    return -(-x // m) * m


@functools.partial(jax.jit, static_argnames=("tile_lanes", "mask_dtype"))
def blend_block(fg_nchw, bg_nchw, weight, bias, *, tile_lanes=32768,
                mask_dtype=None):
    """fg_nchw, bg_nchw: (N, C, H, W). weight: (1, C, 1, 1). bias: (1,)."""
    n, c, h, w = fg_nchw.shape
    k = weight.shape[-1]
    assert k == 1, "BlendBlock default k=1 (1x1 conv) implemented"
    # TODO(synk): k > 1 spatial convolution path not implemented (module default is k=1).

    act_dtype = fg_nchw.dtype
    # Mask dtype follows the activation dtype (matches Conv2dLayer running in
    # x.dtype).  Pass mask_dtype=jnp.float32 if a full-precision mask is needed.
    mask_dtype = act_dtype if mask_dtype is None else jnp.dtype(mask_dtype)

    weight_gain = 1.0 / math.sqrt(c * k * k)
    w_eff = (weight.astype(jnp.float32) * weight_gain).reshape(1, c, 1)
    b_eff = bias.astype(jnp.float32).reshape(1, 1, 1)

    hw = h * w
    fg3 = fg_nchw.reshape(n, c, hw)     # free reshape; NCHW memory order kept
    bg3 = bg_nchw.reshape(n, c, hw)

    # ---- dtype/sublane-aware lane-tile sizing --------------------------------
    itemsize = jnp.dtype(act_dtype).itemsize
    pack = max(8, 32 // itemsize)                 # sublane pack: 8 f32, 16 bf16
    c_pad_io = _round_up(c, pack)                 # sublane-padded channel rows
    c_pad_f32 = _round_up(c, 8)
    # Per-lane VMEM bytes: double-buffered fg/bg/out/mask I/O blocks in the
    # activation dtype plus in-kernel f32 temporaries (the (C,T) conv product,
    # logits/mask rows) and one native-dtype blend temporary.
    io_per_lane = (3 * c_pad_io + pack) * itemsize
    tmp_per_lane = (c_pad_f32 + 3 * 8) * 4 + c_pad_io * itemsize
    per_lane = 2 * io_per_lane + tmp_per_lane
    budget_bytes = 20 * 1024 * 1024               # per-step VMEM budget
    max_t = max(128, (budget_bytes // per_lane) // 128 * 128)
    hw_cap = _round_up(hw, 128)
    t = min(_round_up(tile_lanes, 128), max_t, hw_cap)

    num_tiles = pl.cdiv(hw, t)                    # remainder block, no padding
    grid = (num_tiles, n)                         # spatial first -> megacore
                                                  # split works even for N == 1

    cost = pl.CostEstimate(
        flops=int(n * hw * (5 * c + 4)),
        transcendentals=int(n * hw),
        bytes_accessed=int(n * hw * (3 * c * itemsize
                                     + jnp.dtype(mask_dtype).itemsize)
                           + c * 4),
    )

    out3, mask3 = pl.pallas_call(
        _blend_kernel,
        out_shape=(
            jax.ShapeDtypeStruct((n, c, hw), act_dtype),
            jax.ShapeDtypeStruct((n, 1, hw), mask_dtype),
        ),
        grid_spec=pltpu.PrefetchScalarGridSpec(
            num_scalar_prefetch=0,
            grid=grid,
            in_specs=[
                pl.BlockSpec((1, c, t), lambda j, b: (b, 0, j)),
                pl.BlockSpec((1, c, t), lambda j, b: (b, 0, j)),
                pl.BlockSpec((1, c, 1), lambda j, b: (0, 0, 0)),   # resident weights
                pl.BlockSpec((1, 1, 1), lambda j, b: (0, 0, 0)),   # resident bias
            ],
            out_specs=[
                pl.BlockSpec((1, c, t), lambda j, b: (b, 0, j)),
                pl.BlockSpec((1, 1, t), lambda j, b: (b, 0, j)),
            ],
        ),
        compiler_params=pltpu.CompilerParams(
            dimension_semantics=("parallel", "parallel"),
            vmem_limit_bytes=48 * 1024 * 1024,
        ),
        cost_estimate=cost,
    )(fg3, bg3, w_eff, b_eff)

    out = out3.reshape(n, c, h, w)
    mask = mask3.reshape(n, 1, h, w)
    return out, mask


def _reference(fg, bg, weight, bias):
    """Pure-JAX reference matching the PyTorch module (f32 math)."""
    n, c, h, w = fg.shape
    fg32 = fg.astype(jnp.float32)
    bg32 = bg.astype(jnp.float32)
    w_eff = weight.astype(jnp.float32).reshape(1, c, 1, 1) / jnp.sqrt(jnp.float32(c))
    logits = jnp.sum(fg32 * w_eff, axis=1, keepdims=True) + bias.astype(
        jnp.float32).reshape(1, 1, 1, 1)
    mask = jax.nn.sigmoid(logits)
    out = fg32 * (1.0 - mask) + bg32 * mask
    return out, mask


if __name__ == "__main__":
    key = jax.random.PRNGKey(0)
    k_fg, k_bg, k_w, k_fg2, k_bg2 = jax.random.split(key, 5)

    # Deterministic param init mirroring Conv2dLayer.__init__:
    #   weight ~ randn([out_channels=1, in_channels=C, k, k]); bias = zeros([1])
    N, C, H, W = 2, 4, 16, 16
    weight = jax.random.normal(k_w, (1, C, 1, 1), dtype=jnp.float32)
    bias = jnp.zeros((1,), dtype=jnp.float32)

    # Case 1: small f32 shape, lane axis already 128-aligned.
    fg = jax.random.normal(k_fg, (N, C, H, W), dtype=jnp.float32)
    bg = jax.random.normal(k_bg, (N, C, H, W), dtype=jnp.float32)
    out, mask = blend_block(fg, bg, weight, bias)
    jax.block_until_ready((out, mask))
    out_r, mask_r = _reference(fg, bg, weight, bias)
    assert out.shape == (N, C, H, W) and mask.shape == (N, 1, H, W)
    assert jnp.allclose(mask, mask_r, atol=1e-5, rtol=1e-5)
    assert jnp.allclose(out, out_r, atol=1e-5, rtol=1e-5)

    # Case 2: odd spatial size (exercises the Pallas remainder-block path,
    # no wrapper-side padding or slicing).
    H2, W2 = 15, 15
    fg2 = jax.random.normal(k_fg2, (N, C, H2, W2), dtype=jnp.float32)
    bg2 = jax.random.normal(k_bg2, (N, C, H2, W2), dtype=jnp.float32)
    out2, mask2 = blend_block(fg2, bg2, weight, bias)
    jax.block_until_ready((out2, mask2))
    out2_r, mask2_r = _reference(fg2, bg2, weight, bias)
    assert out2.shape == (N, C, H2, W2) and mask2.shape == (N, 1, H2, W2)
    assert jnp.allclose(mask2, mask2_r, atol=1e-5, rtol=1e-5)
    assert jnp.allclose(out2, out2_r, atol=1e-5, rtol=1e-5)

    # Case 3: bf16 activations (f32 conv/sigmoid inside, bf16 blend + traffic).
    fg_b = fg.astype(jnp.bfloat16)
    bg_b = bg.astype(jnp.bfloat16)
    out_b, mask_b = blend_block(fg_b, bg_b, weight, bias)
    jax.block_until_ready((out_b, mask_b))
    out_br, mask_br = _reference(fg_b, bg_b, weight, bias)
    assert out_b.dtype == jnp.bfloat16 and mask_b.dtype == jnp.bfloat16
    assert jnp.allclose(mask_b.astype(jnp.float32), mask_br, atol=2e-2, rtol=2e-2)
    assert jnp.allclose(out_b.astype(jnp.float32), out_br, atol=2e-2, rtol=2e-2)

    # Case 4: f32 mask output for full-precision downstream consumers.
    out_bm, mask_bm = blend_block(fg_b, bg_b, weight, bias, mask_dtype=jnp.float32)
    jax.block_until_ready((out_bm, mask_bm))
    assert mask_bm.dtype == jnp.float32
    assert jnp.allclose(mask_bm, mask_br, atol=2e-2, rtol=2e-2)

    print("KERNEL_OK")
</pallas_src>

<mosaic_0001>
module attributes {stable_mosaic.version = 11 : i64} {
  func.func @_blend_kernel(%arg0: i32, %arg1: i32, %arg2: memref<1x4x256xf32, #tpu.memory_space<vmem>>, %arg3: memref<1x4x256xf32, #tpu.memory_space<vmem>>, %arg4: memref<1x4x1xf32, #tpu.memory_space<vmem>>, %arg5: memref<1x1x1xf32, #tpu.memory_space<vmem>>, %arg6: memref<1x4x256xf32, #tpu.memory_space<vmem>>, %arg7: memref<1x1x256xf32, #tpu.memory_space<vmem>>) attributes {dimension_semantics = [#tpu.dimension_semantics<parallel>, #tpu.dimension_semantics<parallel>], iteration_bounds = array<i64: 1, 2>, scalar_prefetch = 0 : i64, scratch_operands = 0 : i64, tpu.core_type = #tpu.core_type<tc>, window_params = [{transform_indices = @transform_0, window_bounds = array<i64: 1, 4, 256>}, {transform_indices = @transform_1, window_bounds = array<i64: 1, 4, 256>}, {pipeline_mode = #tpu.pipeline_mode<synchronous>, transform_indices = @transform_2, window_bounds = array<i64: 1, 4, 1>}, {pipeline_mode = #tpu.pipeline_mode<synchronous>, transform_indices = @transform_3, window_bounds = array<i64: 1, 1, 1>}, {transform_indices = @transform_4, window_bounds = array<i64: 1, 4, 256>}, {transform_indices = @transform_5, window_bounds = array<i64: 1, 1, 256>}]} {
    %c0 = arith.constant 0 : index
    %c0_0 = arith.constant 0 : index
    %c0_1 = arith.constant 0 : index
    %0 = vector.load %arg2[%c0, %c0_0, %c0_1] : memref<1x4x256xf32, #tpu.memory_space<vmem>>, vector<1x4x256xf32>
    %c0_2 = arith.constant 0 : index
    %c0_3 = arith.constant 0 : index
    %c0_4 = arith.constant 0 : index
    %1 = vector.load %arg3[%c0_2, %c0_3, %c0_4] : memref<1x4x256xf32, #tpu.memory_space<vmem>>, vector<1x4x256xf32>
    %c0_5 = arith.constant 0 : index
    %c0_6 = arith.constant 0 : index
    %c0_7 = arith.constant 0 : index
    %2 = vector.load %arg4[%c0_5, %c0_6, %c0_7] : memref<1x4x1xf32, #tpu.memory_space<vmem>>, vector<1x4x1xf32>
    %c0_8 = arith.constant 0 : index
    %c0_9 = arith.constant 0 : index
    %c0_10 = arith.constant 0 : index
    %3 = vector.load %arg5[%c0_8, %c0_9, %c0_10] : memref<1x1x1xf32, #tpu.memory_space<vmem>>, vector<1x1x1xf32>
    %4 = vector.broadcast %2 : vector<1x4x1xf32> to vector<1x4x256xf32>
    %5 = arith.mulf %0, %4 : vector<1x4x256xf32>
    %cst = arith.constant dense<0.000000e+00> : vector<1x256xf32>
    %6 = vector.multi_reduction <add>, %5, %cst [1] : vector<1x4x256xf32> to vector<1x256xf32>
    %7 = vector.shape_cast %6 : vector<1x256xf32> to vector<1x1x256xf32>
    %8 = vector.broadcast %3 : vector<1x1x1xf32> to vector<1x1x256xf32>
    %9 = arith.addf %7, %8 : vector<1x1x256xf32>
    %10 = arith.negf %9 : vector<1x1x256xf32>
    %11 = math.exp %10 : vector<1x1x256xf32>
    %cst_11 = arith.constant 1.000000e+00 : f32
    %12 = vector.broadcast %cst_11 : f32 to vector<1x1x256xf32>
    %13 = arith.addf %12, %11 : vector<1x1x256xf32>
    %14 = arith.divf %12, %13 : vector<1x1x256xf32>
    %15 = arith.subf %1, %0 : vector<1x4x256xf32>
    %16 = vector.broadcast %14 : vector<1x1x256xf32> to vector<1x4x256xf32>
    %17 = arith.mulf %15, %16 : vector<1x4x256xf32>
    %18 = arith.addf %0, %17 : vector<1x4x256xf32>
    %c0_12 = arith.constant 0 : index
    %c0_13 = arith.constant 0 : index
    %c0_14 = arith.constant 0 : index
    %19 = vector.load %arg6[%c0_12, %c0_13, %c0_14] : memref<1x4x256xf32, #tpu.memory_space<vmem>>, vector<1x4x256xf32>
    tpu.vector_store %arg6[%c0_12, %c0_13, %c0_14], %18 {strides = array<i32>} : memref<1x4x256xf32, #tpu.memory_space<vmem>>, vector<1x4x256xf32>,
    %c0_15 = arith.constant 0 : index
    %c0_16 = arith.constant 0 : index
    %c0_17 = arith.constant 0 : index
    %20 = vector.load %arg7[%c0_15, %c0_16, %c0_17] : memref<1x1x256xf32, #tpu.memory_space<vmem>>, vector<1x1x256xf32>
    tpu.vector_store %arg7[%c0_15, %c0_16, %c0_17], %14 {strides = array<i32>} : memref<1x1x256xf32, #tpu.memory_space<vmem>>, vector<1x1x256xf32>,
    return
  }
  func.func @transform_0(%arg0: i32, %arg1: i32) -> (i32, i32, i32) {
    %c0_i32 = arith.constant 0 : i32
    %c0_i32_0 = arith.constant 0 : i32
    return %arg1, %c0_i32, %arg0 : i32, i32, i32
  }
  func.func @transform_1(%arg0: i32, %arg1: i32) -> (i32, i32, i32) {
    %c0_i32 = arith.constant 0 : i32
    %c0_i32_0 = arith.constant 0 : i32
    return %arg1, %c0_i32, %arg0 : i32, i32, i32
  }
  func.func @transform_2(%arg0: i32, %arg1: i32) -> (i32, i32, i32) {
    %c0_i32 = arith.constant 0 : i32
    %c0_i32_0 = arith.constant 0 : i32
    %c0_i32_1 = arith.constant 0 : i32
    %c0_i32_2 = arith.constant 0 : i32
    return %c0_i32, %c0_i32_0, %c0_i32_1 : i32, i32, i32
  }
  func.func @transform_3(%arg0: i32, %arg1: i32) -> (i32, i32, i32) {
    %c0_i32 = arith.constant 0 : i32
    %c0_i32_0 = arith.constant 0 : i32
    %c0_i32_1 = arith.constant 0 : i32
    %c0_i32_2 = arith.constant 0 : i32
    return %c0_i32, %c0_i32_0, %c0_i32_1 : i32, i32, i32
  }
  func.func @transform_4(%arg0: i32, %arg1: i32) -> (i32, i32, i32) {
    %c0_i32 = arith.constant 0 : i32
    %c0_i32_0 = arith.constant 0 : i32
    return %arg1, %c0_i32, %arg0 : i32, i32, i32
  }
  func.func @transform_5(%arg0: i32, %arg1: i32) -> (i32, i32, i32) {
    %c0_i32 = arith.constant 0 : i32
    %c0_i32_0 = arith.constant 0 : i32
    return %arg1, %c0_i32, %arg0 : i32, i32, i32
  }
}

</mosaic_0001>

<llo_original>
// kernel: blend_block.1
$region0: #{blend_block.1}
  #allocation0 [shape = 'u32[]', space=smem, size = 0x4, offset = 0x4, fixed_abs, tag = 'smem constant byte address 0x4 - core index']
  #allocation1 [shape = 'u32[144,128]{1,0:T(1,128)}', space=vmem, size = 0x12000, scoped, tag = 'internal scratch']
  #allocation2 [shape = 'f32[1,1,1]{2,1,0:T(1,128)S(1)}', space=vmem, size = 0x200, scoped, tag = 'scoped memory for blend_block.1']
  %s0 = inlined_call_operand.vmem [shape: f32[2,4,256], index: 0, kind: input, shape index: {}]
  %s1 = inlined_call_operand.vmem [shape: f32[2,4,256], index: 1, kind: input, shape index: {}]
  %s2 = inlined_call_operand.vmem [shape: f32[1,4,1], index: 2, kind: input, shape index: {}]
  %s3 = inlined_call_operand.<no memory space> [shape: f32[1,1,1], index: 3, kind: input, shape index: {}]
  %s4 = inlined_call_operand.vmem [shape: f32[2,4,256], index: 4, kind: output, shape index: {0}]
  %s5 = inlined_call_operand.vmem [shape: f32[2,1,256], index: 5, kind: output, shape index: {1}]
  %6 = xla_tuple %s4, %s5
  %s7 = sld [smem:[#allocation0]]
  $region57: #{blend_block.1} parent=0
    _
  %s9 = ssub.s32 1, %s7
  %s10 = scalar_select 0, %s9, %s7
  %v11 = vstv %s3
  %12 = vst [vmem:[#allocation2] sm:$0x1] %v11
  loop: start=0, step=1, limit=4
  $region2: #{blend_block.1} parent=0 // loop_pre_header
    _
  $region3: #{blend_block.1} parent=0 // loop_header
    %s14 = sphi 0, %s18
    %p15 = scmp.ge.s32.totalorder %s14, 4
    %s21 = sphi 0, %s33
    %s22 = sphi 0, %s29
    %s23 = sphi 0, %s21
    %s24 = sphi 0, %s22
    %s25 = sphi 0, %s23
    %s26 = sphi 0, %s24
    %s38 = sphi 0, %s40
    %s41 = sphi 0, %s38
    %s42 = sphi 0, %s41
    %s58 = sphi 0, %s42
    %s66 = sphi 0, %s68
    %s69 = sphi 0, %s66
    %s70 = sphi 0, %s69
    %s86 = sphi 0, %s70
    %s90 = sphi 0, %s90
    %s92 = sphi 0, %s90
    %s93 = sphi 0, %s92
    %s107 = sphi 0, %s93
    %s111 = sphi 0, %s111
    %s113 = sphi 0, %s111
    %s114 = sphi 0, %s113
    %s128 = sphi 0, %s114
    %s136 = sphi 0, %s138
    %s139 = sphi 0, %s136
    %s140 = sphi 0, %s139
    %s156 = sphi 0, %s140
    %s164 = sphi 0, %s166
    %s167 = sphi 0, %s164
    %s168 = sphi 0, %s167
    %s184 = sphi 0, %s168
  $region4: #{blend_block.1} parent=0 // loop_header_branch
    %17 = sbr.rel (%p15) target = $region8
  $region5: #{blend_block.1} parent=0 // loop_body
    %s19 = ssub.s32 %s14, 1
    %s20 = ssub.s32 %s14, 2
    %s27 = sadd.s32 1, %s22
    %p28 = scmp.ge.s32.totalorder %s27, 2
    %s29 = scalar_select %p28, 0, %s27
    %s30 = sadd.s32 1, %s21
    %s31 = scalar_select %p28, %s30, %s21
    %p32 = scmp.ge.s32.totalorder %s31, 1
    %s33 = scalar_select %p32, 0, %s31
    %s34 = ssub.s32 %s22, %s29
    %s35 = ssub.s32 %s21, %s33
    %s36 = sor.u32 %s34, %s35
    %p37 = scmp.eq.s32.totalorder %s36, 0
    %s39 = sadd.s32 %s38, 1
    %s40 = scalar_select %p37, %s38, %s39
    %p43 = pneg %p37
    %p44 = scmp.eq.s32.totalorder %s14, 1
    %p45 = por %p43, %p44
    %p46 = scmp.ne.s32.totalorder %s38, %s41
    %p47 = scmp.eq.s32.totalorder %s14, 0
    %p48 = por %p46, %p47
    %p49 = scmp.ne.s32.totalorder %s38, %s41
    %p50 = scmp.eq.s32.totalorder %s19, 1
    %p51 = por %p49, %p50
    %p52 = scmp.ne.s32.totalorder %s41, %s42
    %p53 = scmp.eq.s32.totalorder %s19, 0
    %p54 = por %p52, %p53
    %p55 = scmp.ne.s32.totalorder %s41, %s42
    %p56 = scmp.eq.s32.totalorder %s20, 1
    %p57 = por %p55, %p56
    %p59 = scmp.ne.s32.totalorder %s42, %s58
    %p60 = scmp.eq.s32.totalorder %s20, 0
    %p61 = por %p59, %p60
    %s62 = ssub.s32 %s22, %s29
    %s63 = ssub.s32 %s21, %s33
    %s64 = sor.u32 %s62, %s63
    %p65 = scmp.eq.s32.totalorder %s64, 0
    %s67 = sadd.s32 %s66, 1
    %s68 = scalar_select %p65, %s66, %s67
    %p71 = pneg %p65
    %p72 = scmp.eq.s32.totalorder %s14, 1
    %p73 = por %p71, %p72
    %p74 = scmp.ne.s32.totalorder %s66, %s69
    %p75 = scmp.eq.s32.totalorder %s14, 0
    %p76 = por %p74, %p75
    %p77 = scmp.ne.s32.totalorder %s66, %s69
    %p78 = scmp.eq.s32.totalorder %s19, 1
    %p79 = por %p77, %p78
    %p80 = scmp.ne.s32.totalorder %s69, %s70
    %p81 = scmp.eq.s32.totalorder %s19, 0
    %p82 = por %p80, %p81
    %p83 = scmp.ne.s32.totalorder %s69, %s70
    %p84 = scmp.eq.s32.totalorder %s20, 1
    %p85 = por %p83, %p84
    %p87 = scmp.ne.s32.totalorder %s70, %s86
    %p88 = scmp.eq.s32.totalorder %s20, 0
    %p89 = por %p87, %p88
    %s91 = sadd.s32 %s90, 1
    %p94 = scmp.eq.s32.totalorder %s14, 1
    %p95 = scmp.ne.s32.totalorder %s90, %s92
    %p96 = scmp.eq.s32.totalorder %s14, 0
    %p97 = por %p95, %p96
    %p98 = scmp.ne.s32.totalorder %s90, %s92
    %p99 = scmp.eq.s32.totalorder %s19, 1
    %p100 = por %p98, %p99
    %p101 = scmp.ne.s32.totalorder %s92, %s93
    %p102 = scmp.eq.s32.totalorder %s19, 0
    %p103 = por %p101, %p102
    %p104 = scmp.ne.s32.totalorder %s92, %s93
    %p105 = scmp.eq.s32.totalorder %s20, 1
    %p106 = por %p104, %p105
    %p108 = scmp.ne.s32.totalorder %s93, %s107
    %p109 = scmp.eq.s32.totalorder %s20, 0
    %p110 = por %p108, %p109
    %s112 = sadd.s32 %s111, 1
    %p115 = scmp.eq.s32.totalorder %s14, 1
    %p116 = scmp.ne.s32.totalorder %s111, %s113
    %p117 = scmp.eq.s32.totalorder %s14, 0
    %p118 = por %p116, %p117
    %p119 = scmp.ne.s32.totalorder %s111, %s113
    %p120 = scmp.eq.s32.totalorder %s19, 1
    %p121 = por %p119, %p120
    %p122 = scmp.ne.s32.totalorder %s113, %s114
    %p123 = scmp.eq.s32.totalorder %s19, 0
    %p124 = por %p122, %p123
    %p125 = scmp.ne.s32.totalorder %s113, %s114
    %p126 = scmp.eq.s32.totalorder %s20, 1
    %p127 = por %p125, %p126
    %p129 = scmp.ne.s32.totalorder %s114, %s128
    %p130 = scmp.eq.s32.totalorder %s20, 0
    %p131 = por %p129, %p130
    %s132 = ssub.s32 %s22, %s29
    %s133 = ssub.s32 %s21, %s33
    %s134 = sor.u32 %s132, %s133
    %p135 = scmp.eq.s32.totalorder %s134, 0
    %s137 = sadd.s32 %s136, 1
    %s138 = scalar_select %p135, %s136, %s137
    %p141 = pneg %p135
    %p142 = scmp.eq.s32.totalorder %s14, 1
    %p143 = por %p141, %p142
    %p144 = scmp.ne.s32.totalorder %s136, %s139
    %p145 = scmp.eq.s32.totalorder %s14, 0
    %p146 = por %p144, %p145
    %p147 = scmp.ne.s32.totalorder %s136, %s139
    %p148 = scmp.eq.s32.totalorder %s19, 1
    %p149 = por %p147, %p148
    %p150 = scmp.ne.s32.totalorder %s139, %s140
    %p151 = scmp.eq.s32.totalorder %s19, 0
    %p152 = por %p150, %p151
    %p153 = scmp.ne.s32.totalorder %s139, %s140
    %p154 = scmp.eq.s32.totalorder %s20, 1
    %p155 = por %p153, %p154
    %p157 = scmp.ne.s32.totalorder %s140, %s156
    %p158 = scmp.eq.s32.totalorder %s20, 0
    %p159 = por %p157, %p158
    %s160 = ssub.s32 %s22, %s29
    %s161 = ssub.s32 %s21, %s33
    %s162 = sor.u32 %s160, %s161
    %p163 = scmp.eq.s32.totalorder %s162, 0
    %s165 = sadd.s32 %s164, 1
    %s166 = scalar_select %p163, %s164, %s165
    %p169 = pneg %p163
    %p170 = scmp.eq.s32.totalorder %s14, 1
    %p171 = por %p169, %p170
    %p172 = scmp.ne.s32.totalorder %s164, %s167
    %p173 = scmp.eq.s32.totalorder %s14, 0
    %p174 = por %p172, %p173
    %p175 = scmp.ne.s32.totalorder %s164, %s167
    %p176 = scmp.eq.s32.totalorder %s19, 1
    %p177 = por %p175, %p176
    %p178 = scmp.ne.s32.totalorder %s167, %s168
    %p179 = scmp.eq.s32.totalorder %s19, 0
    %p180 = por %p178, %p179
    %p181 = scmp.ne.s32.totalorder %s167, %s168
    %p182 = scmp.eq.s32.totalorder %s20, 1
    %p183 = por %p181, %p182
    %p185 = scmp.ne.s32.totalorder %s168, %s184
    %p186 = scmp.eq.s32.totalorder %s20, 0
    %p187 = por %p185, %p186
    %p188 = scmp.le.s32.totalorder 1, %s14
    %p189 = scmp.lt.s32.totalorder %s14, 3
    %p190 = pnand %p188, %p189
    %p191 = pneg %p190
    // Predicated region
    $region9: #{blend_block.1} parent=5 // pred_check
      _
    $region10: #{blend_block.1} parent=5 // pred_check_branch
      %193 = sbr.rel (%p190) target = $region12
    $region11: #{blend_block.1} parent=5 // pred_region
      %s194 = ssub.s32 %s14, 1
      // Predicated region
      $region13: #{blend_block.1} parent=11 // pred_check
        %p195 = pneg %p103
      $region14: #{blend_block.1} parent=11 // pred_check_branch
        %197 = sbr.rel (%p195) target = $region16
      $region15: #{blend_block.1} parent=11 // pred_region
        _
      $region16: #{blend_block.1} parent=11 // pred_fallthru
        _
      // Predicated region
      $region17: #{blend_block.1} parent=11 // pred_check
        %p198 = pneg %p124
      $region18: #{blend_block.1} parent=11 // pred_check_branch
        %200 = sbr.rel (%p198) target = $region20
      $region19: #{blend_block.1} parent=11 // pred_region
        _
      $region20: #{blend_block.1} parent=11 // pred_fallthru
        _
    $region12: #{blend_block.1} parent=5 // pred_fallthru
      _
    %p201 = scmp.lt.s32.totalorder %s14, 2
    // Predicated region
    $region21: #{blend_block.1} parent=5 // pred_check
      %p202 = pneg %p201
    $region22: #{blend_block.1} parent=5 // pred_check_branch
      %204 = sbr.rel (%p202) target = $region24
    $region23: #{blend_block.1} parent=5 // pred_region
      // Predicated region
      $region25: #{blend_block.1} parent=23 // pred_check
        %p205 = pneg %p48
      $region26: #{blend_block.1} parent=23 // pred_check_branch
        %207 = sbr.rel (%p205) target = $region28
      $region27: #{blend_block.1} parent=23 // pred_region
        %s208 = smul.u32 2, %s21
        %p209 = scmp.lt.s32.totalorder %s22, 1
        %s210 = scalar_select %p209, %s22, 1
        %p211 = scmp.lt.s32.totalorder %s208, 1
        %s212 = scalar_select %p211, %s208, 1
        %s213 = smul.addr %s210, 2
        %s214 = sadd.s32 %s212, %s213
        %s215 = smul.addr %s214, 4
        %s216 = scalar_lea.vmem %s0, %s215
        %s217 = smul.u32 2, %s21
      $region28: #{blend_block.1} parent=23 // pred_fallthru
        _
      // Predicated region
      $region29: #{blend_block.1} parent=23 // pred_check
        %p218 = pneg %p76
      $region30: #{blend_block.1} parent=23 // pred_check_branch
        %220 = sbr.rel (%p218) target = $region32
      $region31: #{blend_block.1} parent=23 // pred_region
        %s221 = smul.u32 2, %s21
        %p222 = scmp.lt.s32.totalorder %s22, 1
        %s223 = scalar_select %p222, %s22, 1
        %p224 = scmp.lt.s32.totalorder %s221, 1
        %s225 = scalar_select %p224, %s221, 1
        %s226 = smul.addr %s223, 2
        %s227 = sadd.s32 %s225, %s226
        %s228 = smul.addr %s227, 4
        %s229 = scalar_lea.vmem %s1, %s228
        %s230 = smul.u32 2, %s21
      $region32: #{blend_block.1} parent=23 // pred_fallthru
        _
    $region24: #{blend_block.1} parent=5 // pred_fallthru
      _
    %p231 = scmp.le.s32.totalorder 1, %s14
    %p232 = scmp.lt.s32.totalorder %s14, 3
    %p233 = pnand %p231, %p232
    %p234 = pneg %p233
    // Predicated region
    $region33: #{blend_block.1} parent=5 // pred_check
      _
    $region34: #{blend_block.1} parent=5 // pred_check_branch
      %236 = sbr.rel (%p233) target = $region36
    $region35: #{blend_block.1} parent=5 // pred_region
      %s237 = ssub.s32 %s14, 1
      %s238 = smul.u32 2, %s23
      %p239 = scmp.lt.s32.totalorder %s24, 1
      %s240 = scalar_select %p239, %s24, 1
      %p241 = scmp.lt.s32.totalorder %s238, 1
      %s242 = scalar_select %p241, %s238, 1
      %s243 = smul.addr %s240, 2
      %s244 = sadd.s32 %s242, %s243
      %s245 = smul.addr %s244, 4
      %s246 = scalar_lea.vmem %s0, %s245
      %p247 = pneg %p54
      %p248 = pneg %p51
      %s249 = smul.u32 2, %s23
      %p250 = scmp.lt.s32.totalorder %s24, 1
      %s251 = scalar_select %p250, %s24, 1
      %p252 = scmp.lt.s32.totalorder %s249, 1
      %s253 = scalar_select %p252, %s249, 1
      %s254 = smul.addr %s251, 2
      %s255 = sadd.s32 %s253, %s254
      %s256 = smul.addr %s255, 4
      %s257 = scalar_lea.vmem %s1, %s256
      %p258 = pneg %p82
      %p259 = pneg %p79
      %p260 = pneg %p103
      %p261 = pneg %p100
      %p262 = pneg %p124
      %p263 = pneg %p121
      %p264 = pneg %p152
      %p265 = pneg %p149
      %s266 = smul.u32 2, %s23
      %p267 = scmp.lt.s32.totalorder %s24, 1
      %s268 = scalar_select %p267, %s24, 1
      %p269 = scmp.lt.s32.totalorder %s266, 1
      %s270 = scalar_select %p269, %s266, 1
      %s271 = smul.addr %s268, 2
      %s272 = sadd.s32 %s270, %s271
      %s273 = smul.addr %s272, 4
      %s274 = scalar_lea.vmem %s4, %s273
      %p275 = pneg %p180
      %p276 = pneg %p177
      %s277 = smul.u32 2, %s23
      %p278 = scmp.lt.s32.totalorder %s24, 1
      %s279 = scalar_select %p278, %s24, 1
      %p280 = scmp.lt.s32.totalorder %s277, 1
      %s281 = scalar_select %p280, %s277, 1
      %s282 = smul.addr %s279, 2
      %s283 = sadd.s32 %s281, %s282
      %s284 = scalar_lea.vmem %s5, %s283
      %s285 = smul.u32 2, %s23
      %p286 = scmp.lt.s32.totalorder %s24, 1
      %s287 = scalar_select %p286, %s24, 1
      %p288 = scmp.lt.s32.totalorder %s285, 1
      %s289 = scalar_select %p288, %s285, 1
      %s290 = smul.addr %s287, 2
      %s291 = sadd.s32 %s289, %s290
      %s292 = smul.addr %s291, 4
      %s293 = scalar_lea.vmem %s0, %s292
      %s294 = smul.u32 2, %s23
      %s295 = smul.u32 2, %s23
      %p296 = scmp.lt.s32.totalorder %s24, 1
      %s297 = scalar_select %p296, %s24, 1
      %p298 = scmp.lt.s32.totalorder %s295, 1
      %s299 = scalar_select %p298, %s295, 1
      %s300 = smul.addr %s297, 2
      %s301 = sadd.s32 %s299, %s300
      %s302 = smul.addr %s301, 4
      %s303 = scalar_lea.vmem %s1, %s302
      %s304 = smul.u32 2, %s23
      %s305 = smul.u32 2, %s23
      %p306 = scmp.lt.s32.totalorder %s24, 1
      %s307 = scalar_select %p306, %s24, 1
      %p308 = scmp.lt.s32.totalorder %s305, 1
      %s309 = scalar_select %p308, %s305, 1
      %s310 = smul.addr %s307, 2
      %s311 = sadd.s32 %s309, %s310
      %s312 = smul.addr %s311, 4
      %s313 = scalar_lea.vmem %s4, %s312
      %s314 = smul.u32 2, %s23
      %s315 = smul.u32 2, %s23
      %p316 = scmp.lt.s32.totalorder %s24, 1
      %s317 = scalar_select %p316, %s24, 1
      %p318 = scmp.lt.s32.totalorder %s315, 1
      %s319 = scalar_select %p318, %s315, 1
      %s320 = smul.addr %s317, 2
      %s321 = sadd.s32 %s319, %s320
      %s322 = scalar_lea.vmem %s5, %s321
      %s323 = smul.u32 2, %s23
      %v324 = vld [vmem:[%s293] sm:$0xff]
      %v325 = vld [vmem:[%s303] sm:$0xff]
      %v326 = vld [vmem:[%s2] sm:$0xf]
      %v327 = vld [vmem:[#allocation2] sm:$0x1]
      %329 = vset.pattern.permute.xlu0 0
      %330 = vperm.xlu0 %329, %v326
      %v331 = vpop.permute.xlu0 %330
      %v333 = vunpack.c.l.s4 839922192
      %v334 = vunpack.c.0.s8 %v333
      %v335 = vlaneseq
      %v336 = vshrl.u32 %v335, 7
      %v337 = vsub.s32 %v334, %v336
      %v338 = vrot.slane %v331, %v337
      %v340 = vmul.f32 %v324, %v338
      %v342 = vcombine.high %v340, %v340
      %vm344 = vcmask 1043456
      %v345 = vsel %vm344, %v340, 0.0
      %v346 = vrot.slane %v345, 4
      %v347 = vadd.f32 %v345, %v346
      %v348 = vrot.slane %v347, 2
      %v349 = vadd.f32 %v347, %v348
      %v350 = vrot.slane %v349, 1
      %v351 = vadd.f32 %v349, %v350
      %v352 = vsel %vm344, %v342, 0.0
      %v353 = vrot.slane %v352, 4
      %v354 = vadd.f32 %v352, %v353
      %v355 = vrot.slane %v354, 2
      %v356 = vadd.f32 %v354, %v355
      %v357 = vrot.slane %v356, 1
      %v358 = vadd.f32 %v356, %v357
      %360 = vset.pattern.permute.xlu0 0
      %361 = vperm.xlu0 %360, %v327
      %v362 = vpop.permute.xlu0 %361
      %v364 = vlaneseq
      %v365 = vshrl.u32 %v364, 7
      %v366 = vsub.s32 0, %v365
      %v367 = vrot.slane %v362, %v366
      %v368 = vadd.f32 %v351, %v367
      %v369 = vadd.f32 %v358, %v367
      %v370 = vxor.u32 %v368, 2147483648
      %v371 = vxor.u32 %v369, 2147483648
      %v372 = vmul.f32 %v370, 1.442695
      %v373 = vpow.pop %v372
      %v374 = vmul.f32 %v371, 1.442695
      %v375 = vpow.pop %v374
      %v376 = vadd.f32 %v373, 1.0
      %v377 = vadd.f32 %v375, 1.0
      %v378 = vrcp.pop %v376
      %v379 = vmul.f32 1.0, %v378
      %v380 = vrcp.pop %v377
      %v381 = vmul.f32 1.0, %v380
      %v382 = vsub.f32 %v325, %v324
      %v385 = vcombine.low %v379, %v381
      %v387 = vmul.f32 %v382, %v385
      %v388 = vadd.f32 %v324, %v387
      %389 = vst [vmem:[%s313] sm:$0xff] %v388
      %v391 = vunpack.c.l.s4 1966171168
      %v392 = vunpack.c.0.s8 %v391
      %v393 = vlaneseq
      %v394 = vshrl.u32 %v393, 7
      %v395 = vsub.s32 %v392, %v394
      %v396 = vrot.slane %v385, %v395
      %v398 = vunpack.c.l.s4 1966171168
      %v399 = vunpack.c.0.s8 %v398
      %v400 = vlaneseq
      %v401 = vshrl.u32 %v400, 7
      %v402 = vsub.s32 %v399, %v401
      %v403 = vrot.slane %v396, %v402
      %v405 = vlaneseq
      %vm406 = vcmp.ge.s32.totalorder %v405, 0
      %vm407 = vcmp.lt.s32.totalorder %v405, 256
      %vm408 = vmand %vm406, %vm407
      %409 = vst.msk [vmem:[%s322] sm:$0x3] %vm408, %v403
      %s410 = smul.u32 2, %s23
      %p411 = scmp.lt.s32.totalorder %s24, 1
      %s412 = scalar_select %p411, %s24, 1
      %p413 = scmp.lt.s32.totalorder %s410, 1
      %s414 = scalar_select %p413, %s410, 1
      %s415 = smul.addr %s412, 2
      %s416 = sadd.s32 %s414, %s415
      %s417 = smul.addr %s416, 4
      %s418 = scalar_lea.vmem %s4, %s417
      %s419 = smul.u32 2, %s23
      %p420 = scmp.lt.s32.totalorder %s24, 1
      %s421 = scalar_select %p420, %s24, 1
      %p422 = scmp.lt.s32.totalorder %s419, 1
      %s423 = scalar_select %p422, %s419, 1
      %s424 = smul.addr %s421, 2
      %s425 = sadd.s32 %s423, %s424
      %s426 = scalar_lea.vmem %s5, %s425
      // Predicated region
      $region37: #{blend_block.1} parent=35 // pred_check
        %p427 = pneg %p149
      $region38: #{blend_block.1} parent=35 // pred_check_branch
        %429 = sbr.rel (%p427) target = $region40
      $region39: #{blend_block.1} parent=35 // pred_region
        %s430 = smul.u32 2, %s23
      $region40: #{blend_block.1} parent=35 // pred_fallthru
        _
      // Predicated region
      $region41: #{blend_block.1} parent=35 // pred_check
        %p431 = pneg %p177
      $region42: #{blend_block.1} parent=35 // pred_check_branch
        %433 = sbr.rel (%p431) target = $region44
      $region43: #{blend_block.1} parent=35 // pred_region
        %s434 = smul.u32 2, %s23
      $region44: #{blend_block.1} parent=35 // pred_fallthru
        _
    $region36: #{blend_block.1} parent=5 // pred_fallthru
      _
    %p435 = scmp.le.s32.totalorder 2, %s14
    // Predicated region
    $region45: #{blend_block.1} parent=5 // pred_check
      %p436 = pneg %p435
    $region46: #{blend_block.1} parent=5 // pred_check_branch
      %438 = sbr.rel (%p436) target = $region48
    $region47: #{blend_block.1} parent=5 // pred_region
      %s439 = ssub.s32 %s14, 2
      // Predicated region
      $region49: #{blend_block.1} parent=47 // pred_check
        %p440 = pneg %p155
      $region50: #{blend_block.1} parent=47 // pred_check_branch
        %442 = sbr.rel (%p440) target = $region52
      $region51: #{blend_block.1} parent=47 // pred_region
        %s443 = smul.u32 2, %s25
        %p444 = scmp.lt.s32.totalorder %s26, 1
        %s445 = scalar_select %p444, %s26, 1
        %p446 = scmp.lt.s32.totalorder %s443, 1
        %s447 = scalar_select %p446, %s443, 1
        %s448 = smul.addr %s445, 2
        %s449 = sadd.s32 %s447, %s448
        %s450 = smul.addr %s449, 4
        %s451 = scalar_lea.vmem %s4, %s450
      $region52: #{blend_block.1} parent=47 // pred_fallthru
        _
      // Predicated region
      $region53: #{blend_block.1} parent=47 // pred_check
        %p452 = pneg %p183
      $region54: #{blend_block.1} parent=47 // pred_check_branch
        %454 = sbr.rel (%p452) target = $region56
      $region55: #{blend_block.1} parent=47 // pred_region
        %s455 = smul.u32 2, %s25
        %p456 = scmp.lt.s32.totalorder %s26, 1
        %s457 = scalar_select %p456, %s26, 1
        %p458 = scmp.lt.s32.totalorder %s455, 1
        %s459 = scalar_select %p458, %s455, 1
        %s460 = smul.addr %s457, 2
        %s461 = sadd.s32 %s459, %s460
        %s462 = scalar_lea.vmem %s5, %s461
      $region56: #{blend_block.1} parent=47 // pred_fallthru
        _
    $region48: #{blend_block.1} parent=5 // pred_fallthru
      _
  $region6: #{blend_block.1} parent=0 // loop_footer
    %s18 = sadd.s32 1, %s14
  $region7: #{blend_block.1} parent=0 // loop_footer_branch
    %13 = sbr.rel target = $region3
  $region8: #{blend_block.1} parent=0 // loop_exit
    _

</llo_original>
